<compile_context>
chip_gen: v5e
topology: v5e:2x2
jax: 0.10.0
libtpu: 0.0.40
codegen_flags: <defaults>
</compile_context>

<pallas_src>
import math

import jax
import jax.numpy as jnp
from jax.experimental import pallas as pl
from jax.experimental.pallas import tpu as pltpu


# ------------------------------- Pallas kernel -------------------------------

def _add_pe_kernel(x_ref, bias_ref, o_ref):
    # x_ref / bias_ref / o_ref: (1, D, H*W) VMEM tiles. Lane dim = H*W ->
    # full-width vector loads/stores (unmasked when H*W % 128 == 0); a single
    # VPU add per vreg, purely memory-bound.
    o_ref[...] = x_ref[...] + bias_ref[...]


# --------------------------- constant buffer setup ----------------------------

def make_pe_buffers(d_model: int, max_len: int = 32):
    """Replicates PositionalEncoding2D.__init__ buffers as (channel, position) tables.

    Returns:
      pe  (d_model, max_len)  with pe[c, h]  == torch pe[0, c, h, 0]
      pe2 (d_model, max_len)  with pe2[c, w] == torch pe2[0, c, 0, w]  (channel-flipped)
    """
    position = jnp.arange(max_len, dtype=jnp.float32)[:, None]                    # (L, 1)
    div_term = jnp.exp(jnp.arange(0, d_model, 2, dtype=jnp.float32)
                       * (-math.log(10000.0) / d_model))                          # (D/2,)
    coords = (position * div_term).T                                              # (D/2, L)

    pe = jnp.zeros((d_model, max_len), jnp.float32)
    pe = pe.at[0::2, :].set(jnp.sin(coords))
    pe = pe.at[1::2, :].set(jnp.cos(coords))

    pe2 = jnp.zeros((d_model, max_len), jnp.float32)
    pe2 = pe2.at[0::2, :].set(jnp.sin(coords))
    pe2 = pe2.at[1::2, :].set(jnp.cos(coords))
    pe2 = jnp.flip(pe2, axis=0)   # torch.flip(pe2, dims=[1]) flips the channel dim
    return pe, pe2


# --------------------------------- forward -----------------------------------

def positional_encoding_2d(x, pe, pe2):
    """x: (B, d_model, H, W) -> x + pe[:, :, :H, :] + pe2[:, :, :, :W]."""
    B, D, H, W = x.shape
    # Combine the two constant buffers (sliced to H, W) into one (1, D, H*W) bias
    # slab. pe/pe2 are module constants, so this is buffer prep over D*H*W
    # elements (1/(2B) of the kernel's HBM traffic); the full-tensor add over
    # B*D*H*W elements runs inside the Pallas kernel.
    bias = (pe[:, :H, None] + pe2[:, None, :W]).reshape(1, D, H * W).astype(x.dtype)
    x2 = x.reshape(B, D, H * W)   # free row-major reshape -> lane-dense layout

    out2 = pl.pallas_call(
        _add_pe_kernel,
        out_shape=jax.ShapeDtypeStruct((B, D, H * W), x.dtype),
        grid=(B,),
        in_specs=[pl.BlockSpec((1, D, H * W), lambda b: (b, 0, 0)),
                  # constant bias: same block index every step -> DMA'd once,
                  # stays resident in VMEM across the batch loop
                  pl.BlockSpec((1, D, H * W), lambda b: (0, 0, 0))],
        out_specs=pl.BlockSpec((1, D, H * W), lambda b: (b, 0, 0)),
        compiler_params=pltpu.CompilerParams(
            dimension_semantics=("parallel",)),   # batch axis -> both TCs on v7x
    )(x2, bias)
    return out2.reshape(B, D, H, W)


# ----------------------------------- main -------------------------------------

if __name__ == "__main__":
    # Small shapes consistent with the module: NCHW with H, W <= max_len.
    B, D_MODEL, H, W = 2, 32, 16, 16
    MAX_LEN = 32

    key = jax.random.PRNGKey(0)
    x = jax.random.normal(key, (B, D_MODEL, H, W), jnp.float32)
    pe, pe2 = make_pe_buffers(D_MODEL, MAX_LEN)

    fwd = jax.jit(positional_encoding_2d)
    out = jax.block_until_ready(fwd(x, pe, pe2))

    assert out.shape == (B, D_MODEL, H, W), out.shape
    assert jnp.all(jnp.isfinite(out))

    # Plain-JAX reference of the PyTorch forward (same math, broadcast adds).
    ref = x + pe[None, :, :H, None] + pe2[None, :, None, :W]
    assert jnp.allclose(out, ref, atol=1e-6), float(jnp.max(jnp.abs(out - ref)))

    print("KERNEL_OK")
</pallas_src>

<mosaic_0001>
module attributes {stable_mosaic.version = 11 : i64} {
  func.func @_add_pe_kernel(%arg0: i32, %arg1: memref<1x32x256xf32, #tpu.memory_space<vmem>>, %arg2: memref<1x32x256xf32, #tpu.memory_space<vmem>>, %arg3: memref<1x32x256xf32, #tpu.memory_space<vmem>>) attributes {dimension_semantics = [#tpu.dimension_semantics<parallel>], iteration_bounds = array<i64: 2>, scalar_prefetch = 0 : i64, scratch_operands = 0 : i64, tpu.core_type = #tpu.core_type<tc>, window_params = [{transform_indices = @transform_0, window_bounds = array<i64: 1, 32, 256>}, {pipeline_mode = #tpu.pipeline_mode<synchronous>, transform_indices = @transform_1, window_bounds = array<i64: 1, 32, 256>}, {transform_indices = @transform_2, window_bounds = array<i64: 1, 32, 256>}]} {
    %c0 = arith.constant 0 : index
    %c0_0 = arith.constant 0 : index
    %c0_1 = arith.constant 0 : index
    %0 = vector.load %arg1[%c0, %c0_0, %c0_1] : memref<1x32x256xf32, #tpu.memory_space<vmem>>, vector<1x32x256xf32>
    %c0_2 = arith.constant 0 : index
    %c0_3 = arith.constant 0 : index
    %c0_4 = arith.constant 0 : index
    %1 = vector.load %arg2[%c0_2, %c0_3, %c0_4] : memref<1x32x256xf32, #tpu.memory_space<vmem>>, vector<1x32x256xf32>
    %2 = arith.addf %0, %1 : vector<1x32x256xf32>
    %c0_5 = arith.constant 0 : index
    %c0_6 = arith.constant 0 : index
    %c0_7 = arith.constant 0 : index
    %3 = vector.load %arg3[%c0_5, %c0_6, %c0_7] : memref<1x32x256xf32, #tpu.memory_space<vmem>>, vector<1x32x256xf32>
    tpu.vector_store %arg3[%c0_5, %c0_6, %c0_7], %2 {strides = array<i32>} : memref<1x32x256xf32, #tpu.memory_space<vmem>>, vector<1x32x256xf32>,
    return
  }
  func.func @transform_0(%arg0: i32) -> (i32, i32, i32) {
    %c0_i32 = arith.constant 0 : i32
    %c0_i32_0 = arith.constant 0 : i32
    %c0_i32_1 = arith.constant 0 : i32
    return %arg0, %c0_i32, %c0_i32_0 : i32, i32, i32
  }
  func.func @transform_1(%arg0: i32) -> (i32, i32, i32) {
    %c0_i32 = arith.constant 0 : i32
    %c0_i32_0 = arith.constant 0 : i32
    %c0_i32_1 = arith.constant 0 : i32
    %c0_i32_2 = arith.constant 0 : i32
    return %c0_i32, %c0_i32_0, %c0_i32_1 : i32, i32, i32
  }
  func.func @transform_2(%arg0: i32) -> (i32, i32, i32) {
    %c0_i32 = arith.constant 0 : i32
    %c0_i32_0 = arith.constant 0 : i32
    %c0_i32_1 = arith.constant 0 : i32
    return %arg0, %c0_i32, %c0_i32_0 : i32, i32, i32
  }
}

</mosaic_0001>

<llo_original>
// kernel: positional_encoding_2d.1
$region0: #{positional_encoding_2d.1}
  #allocation0 [shape = 'u32[]', space=smem, size = 0x4, offset = 0x4, fixed_abs, tag = 'smem constant byte address 0x4 - core index']
  #allocation1 [shape = 'u32[72,128]{1,0:T(1,128)}', space=vmem, size = 0x9000, scoped, tag = 'internal scratch']
  %s0 = inlined_call_operand.vmem [shape: f32[2,32,256], index: 0, kind: input, shape index: {}]
  %s1 = inlined_call_operand.vmem [shape: f32[1,32,256], index: 1, kind: input, shape index: {}]
  %s2 = inlined_call_operand.vmem [shape: f32[2,32,256], index: 2, kind: output, shape index: {}]
  %s3 = sld [smem:[#allocation0]]
  $region41: #{positional_encoding_2d.1} parent=0
    _
  %s5 = ssub.s32 1, %s3
  %s6 = scalar_select 0, %s5, %s3
  loop: start=0, step=1, limit=4
  $region2: #{positional_encoding_2d.1} parent=0 // loop_pre_header
    _
  $region3: #{positional_encoding_2d.1} parent=0 // loop_header
    %s8 = sphi 0, %s12
    %p9 = scmp.ge.s32.totalorder %s8, 4
    %s18 = sphi 0, %s20
    %s21 = sphi 0, %s18
    %s22 = sphi 0, %s21
    %s38 = sphi 0, %s22
    %s42 = sphi 0, %s42
    %s44 = sphi 0, %s42
    %s45 = sphi 0, %s44
    %s59 = sphi 0, %s45
    %s65 = sphi 0, %s67
    %s68 = sphi 0, %s65
    %s69 = sphi 0, %s68
    %s85 = sphi 0, %s69
  $region4: #{positional_encoding_2d.1} parent=0 // loop_header_branch
    %11 = sbr.rel (%p9) target = $region8
  $region5: #{positional_encoding_2d.1} parent=0 // loop_body
    %s13 = ssub.s32 %s8, 1
    %s14 = ssub.s32 %s8, 2
    %s15 = sadd.s32 %s8, 1
    %s16 = ssub.s32 %s8, %s15
    %p17 = scmp.eq.s32.totalorder %s16, 0
    %s19 = sadd.s32 %s18, 1
    %s20 = scalar_select %p17, %s18, %s19
    %p23 = pneg %p17
    %p24 = scmp.eq.s32.totalorder %s8, 1
    %p25 = por %p23, %p24
    %p26 = scmp.ne.s32.totalorder %s18, %s21
    %p27 = scmp.eq.s32.totalorder %s8, 0
    %p28 = por %p26, %p27
    %p29 = scmp.ne.s32.totalorder %s18, %s21
    %p30 = scmp.eq.s32.totalorder %s13, 1
    %p31 = por %p29, %p30
    %p32 = scmp.ne.s32.totalorder %s21, %s22
    %p33 = scmp.eq.s32.totalorder %s13, 0
    %p34 = por %p32, %p33
    %p35 = scmp.ne.s32.totalorder %s21, %s22
    %p36 = scmp.eq.s32.totalorder %s14, 1
    %p37 = por %p35, %p36
    %p39 = scmp.ne.s32.totalorder %s22, %s38
    %p40 = scmp.eq.s32.totalorder %s14, 0
    %p41 = por %p39, %p40
    %s43 = sadd.s32 %s42, 1
    %p46 = scmp.eq.s32.totalorder %s8, 1
    %p47 = scmp.ne.s32.totalorder %s42, %s44
    %p48 = scmp.eq.s32.totalorder %s8, 0
    %p49 = por %p47, %p48
    %p50 = scmp.ne.s32.totalorder %s42, %s44
    %p51 = scmp.eq.s32.totalorder %s13, 1
    %p52 = por %p50, %p51
    %p53 = scmp.ne.s32.totalorder %s44, %s45
    %p54 = scmp.eq.s32.totalorder %s13, 0
    %p55 = por %p53, %p54
    %p56 = scmp.ne.s32.totalorder %s44, %s45
    %p57 = scmp.eq.s32.totalorder %s14, 1
    %p58 = por %p56, %p57
    %p60 = scmp.ne.s32.totalorder %s45, %s59
    %p61 = scmp.eq.s32.totalorder %s14, 0
    %p62 = por %p60, %p61
    %s63 = ssub.s32 %s8, %s15
    %p64 = scmp.eq.s32.totalorder %s63, 0
    %s66 = sadd.s32 %s65, 1
    %s67 = scalar_select %p64, %s65, %s66
    %p70 = pneg %p64
    %p71 = scmp.eq.s32.totalorder %s8, 1
    %p72 = por %p70, %p71
    %p73 = scmp.ne.s32.totalorder %s65, %s68
    %p74 = scmp.eq.s32.totalorder %s8, 0
    %p75 = por %p73, %p74
    %p76 = scmp.ne.s32.totalorder %s65, %s68
    %p77 = scmp.eq.s32.totalorder %s13, 1
    %p78 = por %p76, %p77
    %p79 = scmp.ne.s32.totalorder %s68, %s69
    %p80 = scmp.eq.s32.totalorder %s13, 0
    %p81 = por %p79, %p80
    %p82 = scmp.ne.s32.totalorder %s68, %s69
    %p83 = scmp.eq.s32.totalorder %s14, 1
    %p84 = por %p82, %p83
    %p86 = scmp.ne.s32.totalorder %s69, %s85
    %p87 = scmp.eq.s32.totalorder %s14, 0
    %p88 = por %p86, %p87
    %p89 = scmp.le.s32.totalorder 1, %s8
    %p90 = scmp.lt.s32.totalorder %s8, 3
    %p91 = pnand %p89, %p90
    %p92 = pneg %p91
    // Predicated region
    $region9: #{positional_encoding_2d.1} parent=5 // pred_check
      _
    $region10: #{positional_encoding_2d.1} parent=5 // pred_check_branch
      %94 = sbr.rel (%p91) target = $region12
    $region11: #{positional_encoding_2d.1} parent=5 // pred_region
      %s95 = ssub.s32 %s8, 1
      // Predicated region
      $region13: #{positional_encoding_2d.1} parent=11 // pred_check
        %p96 = pneg %p55
      $region14: #{positional_encoding_2d.1} parent=11 // pred_check_branch
        %98 = sbr.rel (%p96) target = $region16
      $region15: #{positional_encoding_2d.1} parent=11 // pred_region
        _
      $region16: #{positional_encoding_2d.1} parent=11 // pred_fallthru
        _
    $region12: #{positional_encoding_2d.1} parent=5 // pred_fallthru
      _
    %p99 = scmp.lt.s32.totalorder %s8, 2
    // Predicated region
    $region17: #{positional_encoding_2d.1} parent=5 // pred_check
      %p100 = pneg %p99
    $region18: #{positional_encoding_2d.1} parent=5 // pred_check_branch
      %102 = sbr.rel (%p100) target = $region20
    $region19: #{positional_encoding_2d.1} parent=5 // pred_region
      // Predicated region
      $region21: #{positional_encoding_2d.1} parent=19 // pred_check
        %p103 = pneg %p28
      $region22: #{positional_encoding_2d.1} parent=19 // pred_check_branch
        %105 = sbr.rel (%p103) target = $region24
      $region23: #{positional_encoding_2d.1} parent=19 // pred_region
        %p106 = scmp.lt.s32.totalorder %s8, 1
        %s107 = scalar_select %p106, %s8, 1
        %s108 = smul.addr %s107, 8
        %s109 = smul.addr %s108, 8
        %s110 = scalar_lea.vmem %s0, %s109
      $region24: #{positional_encoding_2d.1} parent=19 // pred_fallthru
        _
    $region20: #{positional_encoding_2d.1} parent=5 // pred_fallthru
      _
    %p111 = scmp.le.s32.totalorder 1, %s8
    %p112 = scmp.lt.s32.totalorder %s8, 3
    %p113 = pnand %p111, %p112
    %p114 = pneg %p113
    // Predicated region
    $region25: #{positional_encoding_2d.1} parent=5 // pred_check
      _
    $region26: #{positional_encoding_2d.1} parent=5 // pred_check_branch
      %116 = sbr.rel (%p113) target = $region28
    $region27: #{positional_encoding_2d.1} parent=5 // pred_region
      %s117 = ssub.s32 %s8, 1
      %p118 = scmp.lt.s32.totalorder %s13, 1
      %s119 = scalar_select %p118, %s13, 1
      %s120 = smul.addr %s119, 8
      %s121 = smul.addr %s120, 8
      %s122 = scalar_lea.vmem %s0, %s121
      %p123 = pneg %p34
      %p124 = pneg %p31
      %p125 = pneg %p55
      %p126 = pneg %p52
      %p127 = pneg %p81
      %p128 = pneg %p78
      %p129 = scmp.lt.s32.totalorder %s13, 1
      %s130 = scalar_select %p129, %s13, 1
      %s131 = smul.addr %s130, 8
      %s132 = smul.addr %s131, 8
      %s133 = scalar_lea.vmem %s2, %s132
      %p134 = scmp.lt.s32.totalorder %s13, 1
      %s135 = scalar_select %p134, %s13, 1
      %s136 = smul.addr %s135, 8
      %s137 = smul.addr %s136, 8
      %s138 = scalar_lea.vmem %s0, %s137
      %p139 = scmp.lt.s32.totalorder %s13, 1
      %s140 = scalar_select %p139, %s13, 1
      %s141 = smul.addr %s140, 8
      %s142 = smul.addr %s141, 8
      %s143 = scalar_lea.vmem %s2, %s142
      %v144 = vld [vmem:[%s138] sm:$0xff]
      %v145 = vld [vmem:[%s138 + $0x8] sm:$0xff]
      %v146 = vld [vmem:[%s138 + $0x10] sm:$0xff]
      %v147 = vld [vmem:[%s138 + $0x18] sm:$0xff]
      %v148 = vld [vmem:[%s138 + $0x20] sm:$0xff]
      %v149 = vld [vmem:[%s138 + $0x28] sm:$0xff]
      %v150 = vld [vmem:[%s138 + $0x30] sm:$0xff]
      %v151 = vld [vmem:[%s138 + $0x38] sm:$0xff]
      %v152 = vld [vmem:[%s1] sm:$0xff]
      %v153 = vld [vmem:[%s1 + $0x8] sm:$0xff]
      %v154 = vld [vmem:[%s1 + $0x10] sm:$0xff]
      %v155 = vld [vmem:[%s1 + $0x18] sm:$0xff]
      %v156 = vld [vmem:[%s1 + $0x20] sm:$0xff]
      %v157 = vld [vmem:[%s1 + $0x28] sm:$0xff]
      %v158 = vld [vmem:[%s1 + $0x30] sm:$0xff]
      %v159 = vld [vmem:[%s1 + $0x38] sm:$0xff]
      %v160 = vadd.f32 %v144, %v152
      %v161 = vadd.f32 %v145, %v153
      %v162 = vadd.f32 %v146, %v154
      %v163 = vadd.f32 %v147, %v155
      %v164 = vadd.f32 %v148, %v156
      %v165 = vadd.f32 %v149, %v157
      %v166 = vadd.f32 %v150, %v158
      %v167 = vadd.f32 %v151, %v159
      %168 = vst [vmem:[%s143] sm:$0xff] %v160
      %169 = vst [vmem:[%s143 + $0x8] sm:$0xff] %v161
      %170 = vst [vmem:[%s143 + $0x10] sm:$0xff] %v162
      %171 = vst [vmem:[%s143 + $0x18] sm:$0xff] %v163
      %172 = vst [vmem:[%s143 + $0x20] sm:$0xff] %v164
      %173 = vst [vmem:[%s143 + $0x28] sm:$0xff] %v165
      %174 = vst [vmem:[%s143 + $0x30] sm:$0xff] %v166
      %175 = vst [vmem:[%s143 + $0x38] sm:$0xff] %v167
      %p176 = scmp.lt.s32.totalorder %s13, 1
      %s177 = scalar_select %p176, %s13, 1
      %s178 = smul.addr %s177, 8
      %s179 = smul.addr %s178, 8
      %s180 = scalar_lea.vmem %s2, %s179
      // Predicated region
      $region29: #{positional_encoding_2d.1} parent=27 // pred_check
        %p181 = pneg %p78
      $region30: #{positional_encoding_2d.1} parent=27 // pred_check_branch
        %183 = sbr.rel (%p181) target = $region32
      $region31: #{positional_encoding_2d.1} parent=27 // pred_region
        _
      $region32: #{positional_encoding_2d.1} parent=27 // pred_fallthru
        _
    $region28: #{positional_encoding_2d.1} parent=5 // pred_fallthru
      _
    %p184 = scmp.le.s32.totalorder 2, %s8
    // Predicated region
    $region33: #{positional_encoding_2d.1} parent=5 // pred_check
      %p185 = pneg %p184
    $region34: #{positional_encoding_2d.1} parent=5 // pred_check_branch
      %187 = sbr.rel (%p185) target = $region36
    $region35: #{positional_encoding_2d.1} parent=5 // pred_region
      %s188 = ssub.s32 %s8, 2
      // Predicated region
      $region37: #{positional_encoding_2d.1} parent=35 // pred_check
        %p189 = pneg %p84
      $region38: #{positional_encoding_2d.1} parent=35 // pred_check_branch
        %191 = sbr.rel (%p189) target = $region40
      $region39: #{positional_encoding_2d.1} parent=35 // pred_region
        %p192 = scmp.lt.s32.totalorder %s14, 1
        %s193 = scalar_select %p192, %s14, 1
        %s194 = smul.addr %s193, 8
        %s195 = smul.addr %s194, 8
        %s196 = scalar_lea.vmem %s2, %s195
      $region40: #{positional_encoding_2d.1} parent=35 // pred_fallthru
        _
    $region36: #{positional_encoding_2d.1} parent=5 // pred_fallthru
      _
  $region6: #{positional_encoding_2d.1} parent=0 // loop_footer
    %s12 = sadd.s32 1, %s8
  $region7: #{positional_encoding_2d.1} parent=0 // loop_footer_branch
    %7 = sbr.rel target = $region3
  $region8: #{positional_encoding_2d.1} parent=0 // loop_exit
    _

</llo_original>
